<compile_context>
chip_gen: v7x
topology: tpu7x:2x2x1
jax: 0.10.0
libtpu: 0.0.40
codegen_flags: <defaults>
</compile_context>

<pallas_src>
import math
from functools import partial

import jax
import jax.numpy as jnp
import numpy as np
from jax import lax
from jax.experimental import pallas as pl
from jax.experimental.pallas import tpu as pltpu

LEAKY_SLOPE = 0.01          # nn.LeakyReLU default
HARDTANH_LO = -3.14
HARDTANH_HI = 3.14
LANES = 128
MAX_TB = 2048               # batch-tile cap (lanes); ~2-3 MiB live VMEM per step

# fused (actor | critic) hidden widths after each shared layer
M1, M2, M3 = 80, 56, 24


def _round_up(x, m):
    return ((x + m - 1) // m) * m


def _leaky_relu(x):
    return jnp.where(x > 0, x, LEAKY_SLOPE * x)


def evaluate_kernel(state_ref, action_ref, w_ref, v_ref, out_ref, *, s_pad, a_pad):
    """Fused actor+critic forward + diag-MVN log_prob, feature-major layout.

    state_ref  : [s_pad, TB]    states  (features on sublanes, batch on lanes)
    action_ref : [a_pad, TB]    actions
    w_ref      : [4, 128, 128]  block-diagonal packed weights, [out, in] (resident)
    v_ref      : [128, 8]       bias columns | w5 | inv_var | constants (resident)
    out_ref    : [8, TB]        row 0 = log_prob, row 1 = value
    """
    m4 = a_pad + 8                         # live rows of the fused layer-4 output
    x = state_ref[...]                     # [s_pad, TB]
    a = action_ref[...]                    # [a_pad, TB]

    # ---- fused (actor | critic) layers: ref-level slices load only live rows/cols ----
    h = _leaky_relu(jnp.dot(w_ref[0, :M1, :s_pad], x,
                            preferred_element_type=jnp.float32) + v_ref[:M1, 0:1])
    h = _leaky_relu(jnp.dot(w_ref[1, :M2, :M1], h,
                            preferred_element_type=jnp.float32) + v_ref[:M2, 1:2])
    h = _leaky_relu(jnp.dot(w_ref[2, :M3, :M2], h,
                            preferred_element_type=jnp.float32) + v_ref[:M3, 2:3])
    h4 = jnp.dot(w_ref[3, :m4, :M3], h,
                 preferred_element_type=jnp.float32) + v_ref[:m4, 3:4]

    # actor head (rows [0, action_dim)): Hardtanh(-3.14, 3.14).
    # Rows [action_dim, a_pad) of h4 are exactly zero by packing and inv_var is
    # zero there too, so padded rows drop out of the Mahalanobis term.
    mean = jnp.clip(h4[:a_pad, :], HARDTANH_LO, HARDTANH_HI)
    diff = a - mean
    maha = jnp.sum(diff * diff * v_ref[:a_pad, 5:6], axis=0, keepdims=True)
    log_prob = -0.5 * maha + v_ref[1:2, 6:7]                         # [1, TB]

    # critic head (rows [a_pad, a_pad+5), no overlap with the action rows):
    # LeakyReLU then 5->1 linear (w5 column is zero outside its 5 rows).
    c4 = _leaky_relu(h4[a_pad:m4, :])
    value = jnp.sum(c4 * v_ref[a_pad:m4, 4:5], axis=0,
                    keepdims=True) + v_ref[0:1, 6:7]                 # [1, TB]

    # lane-dense [8, TB] output slab: row0 = log_prob, row1 = value.
    row = lax.broadcasted_iota(jnp.int32, out_ref.shape, 0)
    out_ref[...] = jnp.where(row == 0, log_prob,
                             jnp.where(row == 1, value, 0.0))


def init_params(key, state_dim, action_dim):
    """Deterministic PyTorch-Linear-style init; weights stored as [in, out]."""
    actor_dims = [(state_dim, 40), (40, 28), (28, 14), (14, action_dim)]
    critic_dims = [(state_dim, 40), (40, 28), (28, 10), (10, 5), (5, 1)]
    params = []
    for fan_in, fan_out in actor_dims + critic_dims:
        key, kw, kb = jax.random.split(key, 3)
        bound = 1.0 / math.sqrt(fan_in)
        w = jax.random.uniform(kw, (fan_in, fan_out), jnp.float32, -bound, bound)
        b = jax.random.uniform(kb, (fan_out,), jnp.float32, -bound, bound)
        params.append(w)
        params.append(b)
    return params  # 9 layers * 2 = 18 arrays


def pack_params(params, action_var, state_dim, action_dim):
    """Pack params + distribution constants into 2 contiguous f32 buffers.

    Weights are stored transposed ([out, in]) so the kernel runs feature-major
    (batch on lanes): h_out = W_T @ h_in.  The critic layer-4 head is placed at
    rows [a_pad, a_pad+5) so it can NEVER overlap the action/Mahalanobis rows
    [0, a_pad) (v1 relied on zero-padded inv_var for that).
    """
    (aw1, ab1, aw2, ab2, aw3, ab3, aw4, ab4,
     cw1, cb1, cw2, cb2, cw3, cb3, cw4, cb4, cw5, cb5) = [
        np.asarray(p, np.float32) for p in params]
    ad = action_dim
    a_pad = _round_up(ad, 8)
    assert state_dim <= LANES, "state_dim must fit in 128 lanes"
    assert a_pad + 8 <= LANES, "action_dim too large for the fused layer-4 packing"

    W = np.zeros((4, LANES, LANES), np.float32)
    # layer 1: state -> [actor 40 | critic 40]
    W[0, 0:40, :state_dim] = aw1.T
    W[0, 40:80, :state_dim] = cw1.T
    # layer 2: block-diag [40->28 | 40->28]
    W[1, 0:28, 0:40] = aw2.T
    W[1, 28:56, 40:80] = cw2.T
    # layer 3: block-diag [28->14 | 28->10]
    W[2, 0:14, 0:28] = aw3.T
    W[2, 14:24, 28:56] = cw3.T
    # layer 4: [14->action_dim | 10->5]; critic rows start at a_pad (no overlap)
    W[3, 0:ad, 0:14] = aw4.T
    W[3, a_pad:a_pad + 5, 14:24] = cw4.T

    Vc = np.zeros((LANES, 8), np.float32)
    Vc[0:40, 0] = ab1;  Vc[40:80, 0] = cb1
    Vc[0:28, 1] = ab2;  Vc[28:56, 1] = cb2
    Vc[0:14, 2] = ab3;  Vc[14:24, 2] = cb3
    Vc[0:ad, 3] = ab4;  Vc[a_pad:a_pad + 5, 3] = cb4
    Vc[a_pad:a_pad + 5, 4] = cw5.reshape(-1)              # critic final weight column
    var = np.asarray(action_var, np.float64).reshape(-1)
    Vc[0:ad, 5] = (1.0 / var).astype(np.float32)          # inv_var, zero past action_dim
    log2pi = math.log(2.0 * math.pi)
    sum_log_var = float(np.sum(np.log(var)))
    Vc[0, 6] = float(cb5.reshape(-1)[0])                  # cb5
    Vc[1, 6] = -0.5 * ad * log2pi - 0.5 * sum_log_var     # log_prob constant
    entropy_const = 0.5 * ad * (1.0 + log2pi) + 0.5 * sum_log_var
    return jnp.asarray(W), jnp.asarray(Vc), float(entropy_const)


def actor_critic_evaluate(state, action, w_packed, v_packed, entropy_const):
    B, state_dim = state.shape
    _, action_dim = action.shape
    s_pad = _round_up(state_dim, 8)
    a_pad = _round_up(action_dim, 8)

    # Batch tile on the lane axis: multiple of 128, capped at MAX_TB, chosen so
    # padding waste is < 128 columns regardless of B.
    b128 = _round_up(max(B, 1), LANES)
    n_steps = -(-b128 // MAX_TB)
    tb = _round_up(-(-b128 // n_steps), LANES)
    b_pad = tb * n_steps

    # Feature-major inputs: [features, batch] with zero padding (pad, not scatter).
    state_t = jnp.pad(state.astype(jnp.float32).T,
                      ((0, s_pad - state_dim), (0, b_pad - B)))
    action_t = jnp.pad(action.astype(jnp.float32).T,
                       ((0, a_pad - action_dim), (0, b_pad - B)))

    kernel = partial(evaluate_kernel, s_pad=s_pad, a_pad=a_pad)

    # TODO(synk): on v7x, verify the ("parallel",) batch axis shards across both
    # TensorCores; if not, add a leading size-2 CORE_PARALLEL grid axis for large B.
    out = pl.pallas_call(
        kernel,
        out_shape=jax.ShapeDtypeStruct((8, b_pad), jnp.float32),
        grid_spec=pltpu.PrefetchScalarGridSpec(
            num_scalar_prefetch=0,
            grid=(n_steps,),
            in_specs=[
                pl.BlockSpec((s_pad, tb), lambda i: (0, i)),
                pl.BlockSpec((a_pad, tb), lambda i: (0, i)),
                pl.BlockSpec((4, LANES, LANES), lambda i: (0, 0, 0)),  # resident
                pl.BlockSpec((LANES, 8), lambda i: (0, 0)),            # resident
            ],
            out_specs=pl.BlockSpec((8, tb), lambda i: (0, i)),
        ),
        compiler_params=pltpu.CompilerParams(
            dimension_semantics=("parallel",),
            vmem_limit_bytes=32 * 1024 * 1024),
    )(state_t, action_t, w_packed, v_packed)

    log_prob = out[0, :B]
    value = out[1, :B]
    # dist.entropy() is batch-independent for a fixed diagonal covariance.
    entropy = jnp.full((B,), entropy_const, jnp.float32)
    return log_prob, value, entropy


def _reference(state, action, action_var, params):
    """Pure-JAX reference matching the PyTorch evaluate()."""
    (aw1, ab1, aw2, ab2, aw3, ab3, aw4, ab4,
     cw1, cb1, cw2, cb2, cw3, cb3, cw4, cb4, cw5, cb5) = params

    def lrelu(x):
        return jnp.where(x > 0, x, LEAKY_SLOPE * x)

    h = lrelu(state @ aw1 + ab1)
    h = lrelu(h @ aw2 + ab2)
    h = lrelu(h @ aw3 + ab3)
    mean = jnp.clip(h @ aw4 + ab4, HARDTANH_LO, HARDTANH_HI)

    c = lrelu(state @ cw1 + cb1)
    c = lrelu(c @ cw2 + cb2)
    c = lrelu(c @ cw3 + cb3)
    c = lrelu(c @ cw4 + cb4)
    value = (c @ cw5 + cb5)[:, 0]

    k = action.shape[-1]
    diff = action - mean
    logp = (-0.5 * jnp.sum(diff * diff / action_var, axis=-1)
            - 0.5 * k * math.log(2.0 * math.pi)
            - 0.5 * jnp.sum(jnp.log(action_var)))
    ent = 0.5 * k * (1.0 + math.log(2.0 * math.pi)) + 0.5 * jnp.sum(jnp.log(action_var))
    ent = jnp.full((state.shape[0],), ent, jnp.float32)
    return logp, value, ent


if __name__ == "__main__":
    STATE_DIM = 8
    ACTION_DIM = 4
    ACTION_STD = 0.5

    key = jax.random.PRNGKey(0)
    k_params, k_data = jax.random.split(key)

    params = init_params(k_params, STATE_DIM, ACTION_DIM)
    action_var = jnp.full((ACTION_DIM,), ACTION_STD * ACTION_STD, jnp.float32)
    w_packed, v_packed, entropy_const = pack_params(params, action_var, STATE_DIM, ACTION_DIM)

    # batch=2: small case; batch=2200: exercises the multi-tile grid (2 steps of 1152 lanes).
    for batch in (2, 2200):
        k_state, k_action = jax.random.split(jax.random.fold_in(k_data, batch))
        state = jax.random.normal(k_state, (batch, STATE_DIM), jnp.float32)
        action = jax.random.normal(k_action, (batch, ACTION_DIM), jnp.float32)

        logp, value, entropy = actor_critic_evaluate(
            state, action, w_packed, v_packed, entropy_const)
        jax.block_until_ready((logp, value, entropy))

        ref_logp, ref_value, ref_entropy = _reference(state, action, action_var, params)
        # small atol slack covers MXU default-precision (bf16-truncated) operand
        # differences between the fused kernel and the layer-by-layer reference.
        np.testing.assert_allclose(np.asarray(logp), np.asarray(ref_logp), rtol=1e-4, atol=2e-4)
        np.testing.assert_allclose(np.asarray(value), np.asarray(ref_value), rtol=1e-4, atol=2e-4)
        np.testing.assert_allclose(np.asarray(entropy), np.asarray(ref_entropy), rtol=1e-4, atol=2e-4)

    # TODO(synk): act()'s dist.sample() needs host-side RNG matching torch
    # MultivariateNormal sampling; only the deterministic evaluate() path is kernelized.
    print("KERNEL_OK")
</pallas_src>

<mosaic_0001>
module attributes {stable_mosaic.version = 11 : i64} {
  func.func @evaluate_kernel(%arg0: i32, %arg1: memref<8x128xf32, #tpu.memory_space<vmem>>, %arg2: memref<8x128xf32, #tpu.memory_space<vmem>>, %arg3: memref<4x128x128xf32, #tpu.memory_space<vmem>>, %arg4: memref<128x8xf32, #tpu.memory_space<vmem>>, %arg5: memref<8x128xf32, #tpu.memory_space<vmem>>) attributes {dimension_semantics = [#tpu.dimension_semantics<parallel>], iteration_bounds = array<i64: 1>, scalar_prefetch = 0 : i64, scratch_operands = 0 : i64, tpu.core_type = #tpu.core_type<tc>, window_params = [{transform_indices = @transform_0, window_bounds = array<i64: 8, 128>}, {transform_indices = @transform_1, window_bounds = array<i64: 8, 128>}, {pipeline_mode = #tpu.pipeline_mode<synchronous>, transform_indices = @transform_2, window_bounds = array<i64: 4, 128, 128>}, {pipeline_mode = #tpu.pipeline_mode<synchronous>, transform_indices = @transform_3, window_bounds = array<i64: 128, 8>}, {transform_indices = @transform_4, window_bounds = array<i64: 8, 128>}]} {
    %c0 = arith.constant 0 : index
    %c0_0 = arith.constant 0 : index
    %0 = vector.load %arg1[%c0, %c0_0] : memref<8x128xf32, #tpu.memory_space<vmem>>, vector<8x128xf32>
    %c0_1 = arith.constant 0 : index
    %c0_2 = arith.constant 0 : index
    %1 = vector.load %arg2[%c0_1, %c0_2] : memref<8x128xf32, #tpu.memory_space<vmem>>, vector<8x128xf32>
    %c0_3 = arith.constant 0 : index
    %c0_4 = arith.constant 0 : index
    %c0_5 = arith.constant 0 : index
    %2 = vector.load %arg3[%c0_3, %c0_4, %c0_5] : memref<4x128x128xf32, #tpu.memory_space<vmem>>, vector<1x80x8xf32>
    %3 = vector.shape_cast %2 : vector<1x80x8xf32> to vector<80x8xf32>
    %cst = arith.constant dense<0.000000e+00> : vector<80x128xf32>
    %4 = tpu.matmul %3, %0, %cst {dimension_numbers = #tpu.dot_dimension_numbers<[1], [0], [0], [1], [0, 0, 1, 1], [], []>} : vector<80x8xf32>, vector<8x128xf32>, vector<80x128xf32> -> vector<80x128xf32>
    %c0_6 = arith.constant 0 : index
    %c0_7 = arith.constant 0 : index
    %5 = vector.load %arg4[%c0_6, %c0_7] : memref<128x8xf32, #tpu.memory_space<vmem>>, vector<80x1xf32>
    %6 = vector.broadcast %5 : vector<80x1xf32> to vector<80x128xf32>
    %7 = arith.addf %4, %6 : vector<80x128xf32>
    %cst_8 = arith.constant 0.000000e+00 : f32
    %8 = vector.broadcast %cst_8 : f32 to vector<80x128xf32>
    %9 = arith.cmpf ogt, %7, %8 : vector<80x128xf32>
    %cst_9 = arith.constant 0.00999999977 : f32
    %10 = vector.broadcast %cst_9 : f32 to vector<80x128xf32>
    %11 = arith.mulf %10, %7 : vector<80x128xf32>
    %12 = arith.select %9, %7, %11 : vector<80x128xi1>, vector<80x128xf32>
    %c1 = arith.constant 1 : index
    %c0_10 = arith.constant 0 : index
    %c0_11 = arith.constant 0 : index
    %13 = vector.load %arg3[%c1, %c0_10, %c0_11] : memref<4x128x128xf32, #tpu.memory_space<vmem>>, vector<1x56x80xf32>
    %14 = vector.shape_cast %13 : vector<1x56x80xf32> to vector<56x80xf32>
    %cst_12 = arith.constant dense<0.000000e+00> : vector<56x128xf32>
    %15 = tpu.matmul %14, %12, %cst_12 {dimension_numbers = #tpu.dot_dimension_numbers<[1], [0], [0], [1], [0, 0, 1, 1], [], []>} : vector<56x80xf32>, vector<80x128xf32>, vector<56x128xf32> -> vector<56x128xf32>
    %c0_13 = arith.constant 0 : index
    %c1_14 = arith.constant 1 : index
    %16 = vector.load %arg4[%c0_13, %c1_14] : memref<128x8xf32, #tpu.memory_space<vmem>>, vector<56x1xf32>
    %17 = vector.broadcast %16 : vector<56x1xf32> to vector<56x128xf32>
    %18 = arith.addf %15, %17 : vector<56x128xf32>
    %cst_15 = arith.constant 0.000000e+00 : f32
    %19 = vector.broadcast %cst_15 : f32 to vector<56x128xf32>
    %20 = arith.cmpf ogt, %18, %19 : vector<56x128xf32>
    %cst_16 = arith.constant 0.00999999977 : f32
    %21 = vector.broadcast %cst_16 : f32 to vector<56x128xf32>
    %22 = arith.mulf %21, %18 : vector<56x128xf32>
    %23 = arith.select %20, %18, %22 : vector<56x128xi1>, vector<56x128xf32>
    %c2 = arith.constant 2 : index
    %c0_17 = arith.constant 0 : index
    %c0_18 = arith.constant 0 : index
    %24 = vector.load %arg3[%c2, %c0_17, %c0_18] : memref<4x128x128xf32, #tpu.memory_space<vmem>>, vector<1x24x56xf32>
    %25 = vector.shape_cast %24 : vector<1x24x56xf32> to vector<24x56xf32>
    %cst_19 = arith.constant dense<0.000000e+00> : vector<24x128xf32>
    %26 = tpu.matmul %25, %23, %cst_19 {dimension_numbers = #tpu.dot_dimension_numbers<[1], [0], [0], [1], [0, 0, 1, 1], [], []>} : vector<24x56xf32>, vector<56x128xf32>, vector<24x128xf32> -> vector<24x128xf32>
    %c0_20 = arith.constant 0 : index
    %c2_21 = arith.constant 2 : index
    %27 = vector.load %arg4[%c0_20, %c2_21] : memref<128x8xf32, #tpu.memory_space<vmem>>, vector<24x1xf32>
    %28 = vector.broadcast %27 : vector<24x1xf32> to vector<24x128xf32>
    %29 = arith.addf %26, %28 : vector<24x128xf32>
    %cst_22 = arith.constant 0.000000e+00 : f32
    %30 = vector.broadcast %cst_22 : f32 to vector<24x128xf32>
    %31 = arith.cmpf ogt, %29, %30 : vector<24x128xf32>
    %cst_23 = arith.constant 0.00999999977 : f32
    %32 = vector.broadcast %cst_23 : f32 to vector<24x128xf32>
    %33 = arith.mulf %32, %29 : vector<24x128xf32>
    %34 = arith.select %31, %29, %33 : vector<24x128xi1>, vector<24x128xf32>
    %c3 = arith.constant 3 : index
    %c0_24 = arith.constant 0 : index
    %c0_25 = arith.constant 0 : index
    %35 = vector.load %arg3[%c3, %c0_24, %c0_25] : memref<4x128x128xf32, #tpu.memory_space<vmem>>, vector<1x16x24xf32>
    %36 = vector.shape_cast %35 : vector<1x16x24xf32> to vector<16x24xf32>
    %cst_26 = arith.constant dense<0.000000e+00> : vector<16x128xf32>
    %37 = tpu.matmul %36, %34, %cst_26 {dimension_numbers = #tpu.dot_dimension_numbers<[1], [0], [0], [1], [0, 0, 1, 1], [], []>} : vector<16x24xf32>, vector<24x128xf32>, vector<16x128xf32> -> vector<16x128xf32>
    %c0_27 = arith.constant 0 : index
    %c3_28 = arith.constant 3 : index
    %38 = vector.load %arg4[%c0_27, %c3_28] : memref<128x8xf32, #tpu.memory_space<vmem>>, vector<16x1xf32>
    %39 = vector.broadcast %38 : vector<16x1xf32> to vector<16x128xf32>
    %40 = arith.addf %37, %39 : vector<16x128xf32>
    %41 = vector.extract_strided_slice %40 {offsets = [0, 0], sizes = [8, 128], strides = [1, 1]} : vector<16x128xf32> to vector<8x128xf32>
    %cst_29 = arith.constant -3.140000e+00 : f32
    %cst_30 = arith.constant 3.140000e+00 : f32
    %42 = vector.broadcast %cst_29 : f32 to vector<8x128xf32>
    %43 = arith.maximumf %42, %41 : vector<8x128xf32>
    %44 = vector.broadcast %cst_30 : f32 to vector<8x128xf32>
    %45 = arith.minimumf %44, %43 : vector<8x128xf32>
    %46 = arith.subf %1, %45 : vector<8x128xf32>
    %47 = arith.mulf %46, %46 : vector<8x128xf32>
    %c0_31 = arith.constant 0 : index
    %c5 = arith.constant 5 : index
    %48 = vector.load %arg4[%c0_31, %c5] : memref<128x8xf32, #tpu.memory_space<vmem>>, vector<8x1xf32>
    %49 = vector.broadcast %48 : vector<8x1xf32> to vector<8x128xf32>
    %50 = arith.mulf %47, %49 : vector<8x128xf32>
    %cst_32 = arith.constant dense<0.000000e+00> : vector<128xf32>
    %51 = vector.multi_reduction <add>, %50, %cst_32 [0] : vector<8x128xf32> to vector<128xf32>
    %52 = vector.shape_cast %51 : vector<128xf32> to vector<1x128xf32>
    %cst_33 = arith.constant -5.000000e-01 : f32
    %53 = vector.broadcast %cst_33 : f32 to vector<1x128xf32>
    %54 = arith.mulf %53, %52 : vector<1x128xf32>
    %c1_34 = arith.constant 1 : index
    %c6 = arith.constant 6 : index
    %55 = vector.load %arg4[%c1_34, %c6] : memref<128x8xf32, #tpu.memory_space<vmem>>, vector<1x1xf32>
    %56 = vector.broadcast %55 : vector<1x1xf32> to vector<1x128xf32>
    %57 = arith.addf %54, %56 : vector<1x128xf32>
    %58 = vector.extract_strided_slice %40 {offsets = [8, 0], sizes = [8, 128], strides = [1, 1]} : vector<16x128xf32> to vector<8x128xf32>
    %cst_35 = arith.constant 0.000000e+00 : f32
    %59 = vector.broadcast %cst_35 : f32 to vector<8x128xf32>
    %60 = arith.cmpf ogt, %58, %59 : vector<8x128xf32>
    %cst_36 = arith.constant 0.00999999977 : f32
    %61 = vector.broadcast %cst_36 : f32 to vector<8x128xf32>
    %62 = arith.mulf %61, %58 : vector<8x128xf32>
    %63 = arith.select %60, %58, %62 : vector<8x128xi1>, vector<8x128xf32>
    %c8 = arith.constant 8 : index
    %c4 = arith.constant 4 : index
    %64 = vector.load %arg4[%c8, %c4] : memref<128x8xf32, #tpu.memory_space<vmem>>, vector<8x1xf32>
    %65 = vector.broadcast %64 : vector<8x1xf32> to vector<8x128xf32>
    %66 = arith.mulf %63, %65 : vector<8x128xf32>
    %cst_37 = arith.constant dense<0.000000e+00> : vector<128xf32>
    %67 = vector.multi_reduction <add>, %66, %cst_37 [0] : vector<8x128xf32> to vector<128xf32>
    %68 = vector.shape_cast %67 : vector<128xf32> to vector<1x128xf32>
    %c0_38 = arith.constant 0 : index
    %c6_39 = arith.constant 6 : index
    %69 = vector.load %arg4[%c0_38, %c6_39] : memref<128x8xf32, #tpu.memory_space<vmem>>, vector<1x1xf32>
    %70 = vector.broadcast %69 : vector<1x1xf32> to vector<1x128xf32>
    %71 = arith.addf %68, %70 : vector<1x128xf32>
    %72 = tpu.iota {dimensions = array<i32: 0>} : vector<8x128xi32>
    %c0_i32 = arith.constant 0 : i32
    %73 = vector.broadcast %c0_i32 : i32 to vector<8x128xi32>
    %74 = arith.cmpi eq, %72, %73 : vector<8x128xi32>
    %c1_i32 = arith.constant 1 : i32
    %75 = vector.broadcast %c1_i32 : i32 to vector<8x128xi32>
    %76 = arith.cmpi eq, %72, %75 : vector<8x128xi32>
    %cst_40 = arith.constant 0.000000e+00 : f32
    %77 = vector.shape_cast %71 : vector<1x128xf32> to vector<1x128xf32>
    %78 = vector.broadcast %77 : vector<1x128xf32> to vector<8x128xf32>
    %79 = vector.broadcast %cst_40 : f32 to vector<8x128xf32>
    %80 = arith.select %76, %78, %79 : vector<8x128xi1>, vector<8x128xf32>
    %81 = vector.shape_cast %57 : vector<1x128xf32> to vector<1x128xf32>
    %82 = vector.broadcast %81 : vector<1x128xf32> to vector<8x128xf32>
    %83 = arith.select %74, %82, %80 : vector<8x128xi1>, vector<8x128xf32>
    %c0_41 = arith.constant 0 : index
    %c0_42 = arith.constant 0 : index
    %84 = vector.load %arg5[%c0_41, %c0_42] : memref<8x128xf32, #tpu.memory_space<vmem>>, vector<8x128xf32>
    tpu.vector_store %arg5[%c0_41, %c0_42], %83 {strides = array<i32>} : memref<8x128xf32, #tpu.memory_space<vmem>>, vector<8x128xf32>,
    return
  }
  func.func @transform_0(%arg0: i32) -> (i32, i32) {
    %c0_i32 = arith.constant 0 : i32
    %c0_i32_0 = arith.constant 0 : i32
    return %c0_i32, %arg0 : i32, i32
  }
  func.func @transform_1(%arg0: i32) -> (i32, i32) {
    %c0_i32 = arith.constant 0 : i32
    %c0_i32_0 = arith.constant 0 : i32
    return %c0_i32, %arg0 : i32, i32
  }
  func.func @transform_2(%arg0: i32) -> (i32, i32, i32) {
    %c0_i32 = arith.constant 0 : i32
    %c0_i32_0 = arith.constant 0 : i32
    %c0_i32_1 = arith.constant 0 : i32
    %c0_i32_2 = arith.constant 0 : i32
    return %c0_i32, %c0_i32_0, %c0_i32_1 : i32, i32, i32
  }
  func.func @transform_3(%arg0: i32) -> (i32, i32) {
    %c0_i32 = arith.constant 0 : i32
    %c0_i32_0 = arith.constant 0 : i32
    %c0_i32_1 = arith.constant 0 : i32
    return %c0_i32, %c0_i32_0 : i32, i32
  }
  func.func @transform_4(%arg0: i32) -> (i32, i32) {
    %c0_i32 = arith.constant 0 : i32
    %c0_i32_0 = arith.constant 0 : i32
    return %c0_i32, %arg0 : i32, i32
  }
}

</mosaic_0001>

<llo_original>
// kernel: tpu_custom_call.1
$region0: #{tpu_custom_call.1}
  #allocation0 [shape = 'u32[]', space=smem, size = 0x4, offset = 0x4, fixed_abs, tag = 'smem constant byte address 0x4 - core index']
  #allocation1 [shape = 'u32[144,128]{1,0:T(1,128)}', space=vmem, size = 0x12000, scoped, tag = 'internal scratch']
  %s0 = inlined_call_operand.vmem [shape: f32[8,128], index: 0, kind: input, shape index: {}]
  %s1 = inlined_call_operand.vmem [shape: f32[8,128], index: 1, kind: input, shape index: {}]
  %s2 = inlined_call_operand.hbm [shape: f32[4,128,128], index: 2, kind: input, shape index: {}]
  %s3 = inlined_call_operand.vmem [shape: f32[128,8], index: 3, kind: input, shape index: {}]
  %s4 = inlined_call_operand.hbm [shape: f32[8,128], index: 4, kind: output, shape index: {}]
  %s5 = sld [smem:[#allocation0]]
  $region30: #{tpu_custom_call.1} parent=0
    _
  %s7 = ssub.s32 1, %s5
  %s8 = scalar_select 0, %s7, %s5
  $region1: #{tpu_custom_call.1} parent=0
    #allocation2 [shape = 'u8[262144]{0}', space=vmem, size = 0x40000, scoped, tag = 'input window, operand 2, single buffered']
    #allocation3 [shape = 's32[1]{0}', space=sflag, size = 0x4, scoped, tag = 'scoped memory for tpu_custom_call.1']
    #allocation4 [shape = 's32[1]{0}', space=sflag, size = 0x4, scoped, tag = 'scoped memory for tpu_custom_call.1']
    #allocation5 [shape = 'u8[4096]{0}', space=vmem, size = 0x1000, scoped, tag = 'output window, operand 0, single buffered']
    %9 = vsyncpa [#allocation3], 0
    %10 = vsyncpa [#allocation4], 0
    // Predicated region
    $region2: #{tpu_custom_call.1} parent=1 // pred_check
      _
    $region3: #{tpu_custom_call.1} parent=1 // pred_check_branch
      %12 = sbr.rel (0) target = $region5
    $region4: #{tpu_custom_call.1} parent=1 // pred_region
      _
    $region5: #{tpu_custom_call.1} parent=1 // pred_fallthru
      _
    // Predicated region
    $region6: #{tpu_custom_call.1} parent=1 // pred_check
      _
    $region7: #{tpu_custom_call.1} parent=1 // pred_check_branch
      %14 = sbr.rel (0) target = $region9
    $region8: #{tpu_custom_call.1} parent=1 // pred_region
      _
    $region9: #{tpu_custom_call.1} parent=1 // pred_fallthru
      _
    // Predicated region
    $region10: #{tpu_custom_call.1} parent=1 // pred_check
      _
    $region11: #{tpu_custom_call.1} parent=1 // pred_check_branch
      %16 = sbr.rel (0) target = $region13
    $region12: #{tpu_custom_call.1} parent=1 // pred_region
      %s18 = ssub.s32 8192, 8192
      %19 = vsyncadd [#allocation3], %s18
      %s20 = sshll.u32 [#allocation2], 4
      %s21 = int_to_ptr.vmem [resolvable:$true] %s20
      %26 = dma.hbm_to_vmem [thread:$0]  %s2, 8192, %s21, [#allocation3], 128, 128, 8
    $region13: #{tpu_custom_call.1} parent=1 // pred_fallthru
      _
    // Predicated region
    $region14: #{tpu_custom_call.1} parent=1 // pred_check
      _
    $region15: #{tpu_custom_call.1} parent=1 // pred_check_branch
      %28 = sbr.rel (0) target = $region17
    $region16: #{tpu_custom_call.1} parent=1 // pred_region
      _
    $region17: #{tpu_custom_call.1} parent=1 // pred_fallthru
      _
    // Predicated region
    $region18: #{tpu_custom_call.1} parent=1 // pred_check
      _
    $region19: #{tpu_custom_call.1} parent=1 // pred_check_branch
      %30 = sbr.rel (0) target = $region21
    $region20: #{tpu_custom_call.1} parent=1 // pred_region
      %31 = dma.done [#allocation3], 8192
    $region21: #{tpu_custom_call.1} parent=1 // pred_fallthru
      _
    %v32 = vld [vmem:[%s0] sm:$0xff]
    %v33 = vld [vmem:[%s1] sm:$0xff]
    %v34 = vld [vmem:[#allocation2] sm:$0xff]
    %v35 = vld [vmem:[#allocation2 + $0x8] sm:$0xff]
    %v36 = vld [vmem:[#allocation2 + $0x10] sm:$0xff]
    %v37 = vld [vmem:[#allocation2 + $0x18] sm:$0xff]
    %v38 = vld [vmem:[#allocation2 + $0x20] sm:$0xff]
    %v39 = vld [vmem:[#allocation2 + $0x28] sm:$0xff]
    %v40 = vld [vmem:[#allocation2 + $0x30] sm:$0xff]
    %v41 = vld [vmem:[#allocation2 + $0x38] sm:$0xff]
    %v42 = vld [vmem:[#allocation2 + $0x40] sm:$0xff]
    %v43 = vld [vmem:[#allocation2 + $0x48] sm:$0xff]
    %v44 = vld [vmem:[%s3] sm:$0xff]
    %v45 = vld [vmem:[%s3 + $0x8] sm:$0xff]
    %v46 = vld [vmem:[%s3 + $0x10] sm:$0xff]
    %v47 = vld [vmem:[%s3 + $0x18] sm:$0xff]
    %v48 = vld [vmem:[%s3 + $0x20] sm:$0xff]
    %v49 = vld [vmem:[%s3 + $0x28] sm:$0xff]
    %v50 = vld [vmem:[%s3 + $0x30] sm:$0xff]
    %v51 = vld [vmem:[%s3 + $0x38] sm:$0xff]
    %v52 = vld [vmem:[%s3 + $0x40] sm:$0xff]
    %v53 = vld [vmem:[%s3 + $0x48] sm:$0xff]
    %55 = vset.pattern.permute.xlu0 0
    %56 = vperm.xlu0 %55, %v44
    %v57 = vpop.permute.xlu0 %56
    %60 = vset.pattern.permute.xlu0 0
    %61 = vperm.xlu0 %60, %v45
    %v62 = vpop.permute.xlu0 %61
    %65 = vset.pattern.permute.xlu0 0
    %66 = vperm.xlu0 %65, %v46
    %v67 = vpop.permute.xlu0 %66
    %70 = vset.pattern.permute.xlu0 0
    %71 = vperm.xlu0 %70, %v47
    %v72 = vpop.permute.xlu0 %71
    %75 = vset.pattern.permute.xlu0 0
    %76 = vperm.xlu0 %75, %v48
    %v77 = vpop.permute.xlu0 %76
    %80 = vset.pattern.permute.xlu0 0
    %81 = vperm.xlu0 %80, %v49
    %v82 = vpop.permute.xlu0 %81
    %85 = vset.pattern.permute.xlu0 0
    %86 = vperm.xlu0 %85, %v50
    %v87 = vpop.permute.xlu0 %86
    %90 = vset.pattern.permute.xlu0 0
    %91 = vperm.xlu0 %90, %v51
    %v92 = vpop.permute.xlu0 %91
    %95 = vset.pattern.permute.xlu0 0
    %96 = vperm.xlu0 %95, %v52
    %v97 = vpop.permute.xlu0 %96
    %100 = vset.pattern.permute.xlu0 0
    %101 = vperm.xlu0 %100, %v53
    %v102 = vpop.permute.xlu0 %101
    %vm104 = vcmask 64512
    %v106 = vsel %vm104, %v34, 0
    %v109 = vsel %vm104, %v35, 0
    %v112 = vsel %vm104, %v36, 0
    %v115 = vsel %vm104, %v37, 0
    %v118 = vsel %vm104, %v38, 0
    %v121 = vsel %vm104, %v39, 0
    %v124 = vsel %vm104, %v40, 0
    %v127 = vsel %vm104, %v41, 0
    %v130 = vsel %vm104, %v42, 0
    %v133 = vsel %vm104, %v43, 0
    %135 = vmatprep.subr.mxu0 0.0
    %136 = vmatpush1.msra.mxu0 %v32
    %137 = vmatprep.subr.mxu0 0.0
    %138 = vmatpush1.msra.mxu0 0.0
    %139 = vmatprep.subr.mxu0 0.0
    %140 = vmatpush1.msra.mxu0 0.0
    %141 = vmatprep.subr.mxu0 0.0
    %142 = vmatpush1.msra.mxu0 0.0
    %143 = vmatprep.subr.mxu0 0.0
    %144 = vmatpush1.msra.mxu0 0.0
    %145 = vmatprep.subr.mxu0 0.0
    %146 = vmatpush1.msra.mxu0 0.0
    %147 = vmatprep.subr.mxu0 0.0
    %148 = vmatpush1.msra.mxu0 0.0
    %149 = vmatprep.subr.mxu0 0.0
    %150 = vmatpush1.msra.mxu0 0.0
    %151 = vmatprep.subr.mxu0 0.0
    %152 = vmatpush1.msra.mxu0 0.0
    %153 = vmatprep.subr.mxu0 0.0
    %154 = vmatpush1.msra.mxu0 0.0
    %155 = vmatprep.subr.mxu0 0.0
    %156 = vmatpush1.msra.mxu0 0.0
    %157 = vmatprep.subr.mxu0 0.0
    %158 = vmatpush1.msra.mxu0 0.0
    %159 = vmatprep.subr.mxu0 0.0
    %160 = vmatpush1.msra.mxu0 0.0
    %161 = vmatprep.subr.mxu0 0.0
    %162 = vmatpush1.msra.mxu0 0.0
    %163 = vmatprep.subr.mxu0 0.0
    %164 = vmatpush1.msra.mxu0 0.0
    %165 = vmatprep.subr.mxu0 0.0
    %166 = vmatpush1.msra.mxu0 0.0
    %167 = vmatprep.subr.mxu0 0.0
    %168 = vmatpush1.msra.mxu0 0.0
    %169 = vmatprep.subr.mxu0 0.0
    %170 = vmatpush1.msra.mxu0 0.0
    %171 = vmatprep.subr.mxu0 0.0
    %172 = vmatpush1.msra.mxu0 0.0
    %173 = vmatprep.subr.mxu0 0.0
    %174 = vmatpush1.msra.mxu0 0.0
    %175 = vmatprep.subr.mxu0 0.0
    %176 = vmatpush1.msra.mxu0 0.0
    %177 = vmatprep.subr.mxu0 0.0
    %178 = vmatpush1.msra.mxu0 0.0
    %179 = vmatprep.subr.mxu0 0.0
    %180 = vmatpush1.msra.mxu0 0.0
    %181 = vmatprep.subr.mxu0 0.0
    %182 = vmatpush1.msra.mxu0 0.0
    %183 = vmatprep.subr.mxu0 0.0
    %184 = vmatpush1.msra.mxu0 0.0
    %185 = vmatprep.subr.mxu0 0.0
    %186 = vmatpush1.msra.mxu0 0.0
    %187 = vmatprep.subr.mxu0 0.0
    %188 = vmatpush1.msra.mxu0 0.0
    %189 = vmatprep.subr.mxu0 0.0
    %190 = vmatpush1.msra.mxu0 0.0
    %191 = vmatprep.subr.mxu0 0.0
    %192 = vmatpush1.msra.mxu0 0.0
    %193 = vmatprep.subr.mxu0 0.0
    %194 = vmatpush1.msra.mxu0 0.0
    %195 = vmatprep.subr.mxu0 0.0
    %196 = vmatpush1.msra.mxu0 0.0
    %197 = vmatprep.subr.mxu0 0.0
    %198 = vmatpush1.msra.mxu0 0.0
    %199 = vmatprep.mubr.f32.mxu0 0.0
    %200 = vmatmul.mubr.f32.gmra.mrb[0].mxu0 %v106
    %v201 = vpop.f32.mrb[0].mxu0
    %v202 = vadd.f32 %v57, %v201
    %v203 = vpop.f32.mrb[0].mxu0
    %204 = vmatprep.mubr.f32.mxu0 0.0
    %205 = vmatmul.mubr.f32.gmra.mrb[0].mxu0 %v109
    %v206 = vpop.f32.mrb[0].mxu0
    %v207 = vadd.f32 %v62, %v206
    %v208 = vpop.f32.mrb[0].mxu0
    %209 = vmatprep.mubr.f32.mxu0 0.0
    %210 = vmatmul.mubr.f32.gmra.mrb[0].mxu0 %v112
    %v211 = vpop.f32.mrb[0].mxu0
    %v212 = vadd.f32 %v67, %v211
    %v213 = vpop.f32.mrb[0].mxu0
    %214 = vmatprep.mubr.f32.mxu0 0.0
    %215 = vmatmul.mubr.f32.gmra.mrb[0].mxu0 %v115
    %v216 = vpop.f32.mrb[0].mxu0
    %v217 = vadd.f32 %v72, %v216
    %v218 = vpop.f32.mrb[0].mxu0
    %219 = vmatprep.mubr.f32.mxu0 0.0
    %220 = vmatmul.mubr.f32.gmra.mrb[0].mxu0 %v118
    %v221 = vpop.f32.mrb[0].mxu0
    %v222 = vadd.f32 %v77, %v221
    %v223 = vpop.f32.mrb[0].mxu0
    %224 = vmatprep.mubr.f32.mxu0 0.0
    %225 = vmatmul.mubr.f32.gmra.mrb[0].mxu0 %v121
    %v226 = vpop.f32.mrb[0].mxu0
    %v227 = vadd.f32 %v82, %v226
    %v228 = vpop.f32.mrb[0].mxu0
    %229 = vmatprep.mubr.f32.mxu0 0.0
    %230 = vmatmul.mubr.f32.gmra.mrb[0].mxu0 %v124
    %v231 = vpop.f32.mrb[0].mxu0
    %v232 = vadd.f32 %v87, %v231
    %v233 = vpop.f32.mrb[0].mxu0
    %234 = vmatprep.mubr.f32.mxu0 0.0
    %235 = vmatmul.mubr.f32.gmra.mrb[0].mxu0 %v127
    %v236 = vpop.f32.mrb[0].mxu0
    %v237 = vadd.f32 %v92, %v236
    %v238 = vpop.f32.mrb[0].mxu0
    %239 = vmatprep.mubr.f32.mxu0 0.0
    %240 = vmatmul.mubr.f32.gmra.mrb[0].mxu0 %v130
    %v241 = vpop.f32.mrb[0].mxu0
    %v242 = vadd.f32 %v97, %v241
    %v243 = vpop.f32.mrb[0].mxu0
    %244 = vmatprep.mubr.f32.mxu0 0.0
    %245 = vmatmul.mubr.f32.gmra.mrb[0].mxu0 %v133
    %v246 = vpop.f32.mrb[0].mxu0
    %v247 = vadd.f32 %v102, %v246
    %v248 = vpop.f32.mrb[0].mxu0
    %249 = vdwg.mxu0
    %vm250 = vcmp.gt.f32.partialorder %v202, 0.0
    %vm251 = vcmp.gt.f32.partialorder %v207, 0.0
    %vm252 = vcmp.gt.f32.partialorder %v212, 0.0
    %vm253 = vcmp.gt.f32.partialorder %v217, 0.0
    %vm254 = vcmp.gt.f32.partialorder %v222, 0.0
    %vm255 = vcmp.gt.f32.partialorder %v227, 0.0
    %vm256 = vcmp.gt.f32.partialorder %v232, 0.0
    %vm257 = vcmp.gt.f32.partialorder %v237, 0.0
    %vm258 = vcmp.gt.f32.partialorder %v242, 0.0
    %vm259 = vcmp.gt.f32.partialorder %v247, 0.0
    %v260 = vmul.f32 %v202, 0.01
    %v261 = vmul.f32 %v207, 0.01
    %v262 = vmul.f32 %v212, 0.01
    %v263 = vmul.f32 %v217, 0.01
    %v264 = vmul.f32 %v222, 0.01
    %v265 = vmul.f32 %v227, 0.01
    %v266 = vmul.f32 %v232, 0.01
    %v267 = vmul.f32 %v237, 0.01
    %v268 = vmul.f32 %v242, 0.01
    %v269 = vmul.f32 %v247, 0.01
    %v270 = vsel %vm250, %v202, %v260
    %v271 = vsel %vm251, %v207, %v261
    %v272 = vsel %vm252, %v212, %v262
    %v273 = vsel %vm253, %v217, %v263
    %v274 = vsel %vm254, %v222, %v264
    %v275 = vsel %vm255, %v227, %v265
    %v276 = vsel %vm256, %v232, %v266
    %v277 = vsel %vm257, %v237, %v267
    %v278 = vsel %vm258, %v242, %v268
    %v279 = vsel %vm259, %v247, %v269
    %s280 = scalar_lea.vmem [#allocation2], 128
    %v281 = vld [vmem:[%s280] sm:$0xff]
    %v282 = vld [vmem:[%s280 + $0x8] sm:$0xff]
    %v283 = vld [vmem:[%s280 + $0x10] sm:$0xff]
    %v284 = vld [vmem:[%s280 + $0x18] sm:$0xff]
    %v285 = vld [vmem:[%s280 + $0x20] sm:$0xff]
    %v286 = vld [vmem:[%s280 + $0x28] sm:$0xff]
    %v287 = vld [vmem:[%s280 + $0x30] sm:$0xff]
    %v288 = vld [vmem:[%s3] sm:$0xff]
    %v289 = vld [vmem:[%s3 + $0x8] sm:$0xff]
    %v290 = vld [vmem:[%s3 + $0x10] sm:$0xff]
    %v291 = vld [vmem:[%s3 + $0x18] sm:$0xff]
    %v292 = vld [vmem:[%s3 + $0x20] sm:$0xff]
    %v293 = vld [vmem:[%s3 + $0x28] sm:$0xff]
    %v294 = vld [vmem:[%s3 + $0x30] sm:$0xff]
    %296 = vset.pattern.permute.xlu0 1
    %297 = vperm.xlu0 %296, %v288
    %v298 = vpop.permute.xlu0 %297
    %301 = vset.pattern.permute.xlu0 1
    %302 = vperm.xlu0 %301, %v289
    %v303 = vpop.permute.xlu0 %302
    %306 = vset.pattern.permute.xlu0 1
    %307 = vperm.xlu0 %306, %v290
    %v308 = vpop.permute.xlu0 %307
    %311 = vset.pattern.permute.xlu0 1
    %312 = vperm.xlu0 %311, %v291
    %v313 = vpop.permute.xlu0 %312
    %316 = vset.pattern.permute.xlu0 1
    %317 = vperm.xlu0 %316, %v292
    %v318 = vpop.permute.xlu0 %317
    %321 = vset.pattern.permute.xlu0 1
    %322 = vperm.xlu0 %321, %v293
    %v323 = vpop.permute.xlu0 %322
    %326 = vset.pattern.permute.xlu0 1
    %327 = vperm.xlu0 %326, %v294
    %v328 = vpop.permute.xlu0 %327
    %vm330 = vcmask 654336
    %v332 = vsel %vm330, %v281, 0
    %v335 = vsel %vm330, %v282, 0
    %v338 = vsel %vm330, %v283, 0
    %v341 = vsel %vm330, %v284, 0
    %v344 = vsel %vm330, %v285, 0
    %v347 = vsel %vm330, %v286, 0
    %v350 = vsel %vm330, %v287, 0
    %352 = vmatprep.subr.mxu0 0.0
    %353 = vmatpush1.msra.mxu0 %v270
    %354 = vmatprep.subr.mxu0 0.0
    %355 = vmatpush1.msra.mxu0 %v271
    %356 = vmatprep.subr.mxu0 0.0
    %357 = vmatpush1.msra.mxu0 %v272
    %358 = vmatprep.subr.mxu0 0.0
    %359 = vmatpush1.msra.mxu0 %v273
    %360 = vmatprep.subr.mxu0 0.0
    %361 = vmatpush1.msra.mxu0 %v274
    %362 = vmatprep.subr.mxu0 0.0
    %363 = vmatpush1.msra.mxu0 %v275
    %364 = vmatprep.subr.mxu0 0.0
    %365 = vmatpush1.msra.mxu0 %v276
    %366 = vmatprep.subr.mxu0 0.0
    %367 = vmatpush1.msra.mxu0 %v277
    %368 = vmatprep.subr.mxu0 0.0
    %369 = vmatpush1.msra.mxu0 %v278
    %370 = vmatprep.subr.mxu0 0.0
    %371 = vmatpush1.msra.mxu0 %v279
    %372 = vmatprep.subr.mxu0 0.0
    %373 = vmatpush1.msra.mxu0 0.0
    %374 = vmatprep.subr.mxu0 0.0
    %375 = vmatpush1.msra.mxu0 0.0
    %376 = vmatprep.subr.mxu0 0.0
    %377 = vmatpush1.msra.mxu0 0.0
    %378 = vmatprep.subr.mxu0 0.0
    %379 = vmatpush1.msra.mxu0 0.0
    %380 = vmatprep.subr.mxu0 0.0
    %381 = vmatpush1.msra.mxu0 0.0
    %382 = vmatprep.subr.mxu0 0.0
    %383 = vmatpush1.msra.mxu0 0.0
    %384 = vmatprep.subr.mxu0 0.0
    %385 = vmatpush1.msra.mxu0 0.0
    %386 = vmatprep.subr.mxu0 0.0
    %387 = vmatpush1.msra.mxu0 0.0
    %388 = vmatprep.subr.mxu0 0.0
    %389 = vmatpush1.msra.mxu0 0.0
    %390 = vmatprep.subr.mxu0 0.0
    %391 = vmatpush1.msra.mxu0 0.0
    %392 = vmatprep.subr.mxu0 0.0
    %393 = vmatpush1.msra.mxu0 0.0
    %394 = vmatprep.subr.mxu0 0.0
    %395 = vmatpush1.msra.mxu0 0.0
    %396 = vmatprep.subr.mxu0 0.0
    %397 = vmatpush1.msra.mxu0 0.0
    %398 = vmatprep.subr.mxu0 0.0
    %399 = vmatpush1.msra.mxu0 0.0
    %400 = vmatprep.subr.mxu0 0.0
    %401 = vmatpush1.msra.mxu0 0.0
    %402 = vmatprep.subr.mxu0 0.0
    %403 = vmatpush1.msra.mxu0 0.0
    %404 = vmatprep.subr.mxu0 0.0
    %405 = vmatpush1.msra.mxu0 0.0
    %406 = vmatprep.subr.mxu0 0.0
    %407 = vmatpush1.msra.mxu0 0.0
    %408 = vmatprep.subr.mxu0 0.0
    %409 = vmatpush1.msra.mxu0 0.0
    %410 = vmatprep.subr.mxu0 0.0
    %411 = vmatpush1.msra.mxu0 0.0
    %412 = vmatprep.subr.mxu0 0.0
    %413 = vmatpush1.msra.mxu0 0.0
    %414 = vmatprep.subr.mxu0 0.0
    %415 = vmatpush1.msra.mxu0 0.0
    %416 = vmatprep.mubr.f32.mxu0 0.0
    %417 = vmatmul.mubr.f32.gmra.mrb[0].mxu0 %v332
    %v418 = vpop.f32.mrb[0].mxu0
    %v419 = vadd.f32 %v298, %v418
    %v420 = vpop.f32.mrb[0].mxu0
    %421 = vmatprep.mubr.f32.mxu0 0.0
    %422 = vmatmul.mubr.f32.gmra.mrb[0].mxu0 %v335
    %v423 = vpop.f32.mrb[0].mxu0
    %v424 = vadd.f32 %v303, %v423
    %v425 = vpop.f32.mrb[0].mxu0
    %426 = vmatprep.mubr.f32.mxu0 0.0
    %427 = vmatmul.mubr.f32.gmra.mrb[0].mxu0 %v338
    %v428 = vpop.f32.mrb[0].mxu0
    %v429 = vadd.f32 %v308, %v428
    %v430 = vpop.f32.mrb[0].mxu0
    %431 = vmatprep.mubr.f32.mxu0 0.0
    %432 = vmatmul.mubr.f32.gmra.mrb[0].mxu0 %v341
    %v433 = vpop.f32.mrb[0].mxu0
    %v434 = vadd.f32 %v313, %v433
    %v435 = vpop.f32.mrb[0].mxu0
    %436 = vmatprep.mubr.f32.mxu0 0.0
    %437 = vmatmul.mubr.f32.gmra.mrb[0].mxu0 %v344
    %v438 = vpop.f32.mrb[0].mxu0
    %v439 = vadd.f32 %v318, %v438
    %v440 = vpop.f32.mrb[0].mxu0
    %441 = vmatprep.mubr.f32.mxu0 0.0
    %442 = vmatmul.mubr.f32.gmra.mrb[0].mxu0 %v347
    %v443 = vpop.f32.mrb[0].mxu0
    %v444 = vadd.f32 %v323, %v443
    %v445 = vpop.f32.mrb[0].mxu0
    %446 = vmatprep.mubr.f32.mxu0 0.0
    %447 = vmatmul.mubr.f32.gmra.mrb[0].mxu0 %v350
    %v448 = vpop.f32.mrb[0].mxu0
    %v449 = vadd.f32 %v328, %v448
    %v450 = vpop.f32.mrb[0].mxu0
    %451 = vdwg.mxu0
    %vm452 = vcmp.gt.f32.partialorder %v419, 0.0
    %vm453 = vcmp.gt.f32.partialorder %v424, 0.0
    %vm454 = vcmp.gt.f32.partialorder %v429, 0.0
    %vm455 = vcmp.gt.f32.partialorder %v434, 0.0
    %vm456 = vcmp.gt.f32.partialorder %v439, 0.0
    %vm457 = vcmp.gt.f32.partialorder %v444, 0.0
    %vm458 = vcmp.gt.f32.partialorder %v449, 0.0
    %v459 = vmul.f32 %v419, 0.01
    %v460 = vmul.f32 %v424, 0.01
    %v461 = vmul.f32 %v429, 0.01
    %v462 = vmul.f32 %v434, 0.01
    %v463 = vmul.f32 %v439, 0.01
    %v464 = vmul.f32 %v444, 0.01
    %v465 = vmul.f32 %v449, 0.01
    %v466 = vsel %vm452, %v419, %v459
    %v467 = vsel %vm453, %v424, %v460
    %v468 = vsel %vm454, %v429, %v461
    %v469 = vsel %vm455, %v434, %v462
    %v470 = vsel %vm456, %v439, %v463
    %v471 = vsel %vm457, %v444, %v464
    %v472 = vsel %vm458, %v449, %v465
    %s473 = scalar_lea.vmem [#allocation2], 256
    %v474 = vld [vmem:[%s473] sm:$0xff]
    %v475 = vld [vmem:[%s473 + $0x8] sm:$0xff]
    %v476 = vld [vmem:[%s473 + $0x10] sm:$0xff]
    %v477 = vld [vmem:[%s3] sm:$0xff]
    %v478 = vld [vmem:[%s3 + $0x8] sm:$0xff]
    %v479 = vld [vmem:[%s3 + $0x10] sm:$0xff]
    %481 = vset.pattern.permute.xlu0 2
    %482 = vperm.xlu0 %481, %v477
    %v483 = vpop.permute.xlu0 %482
    %486 = vset.pattern.permute.xlu0 2
    %487 = vperm.xlu0 %486, %v478
    %v488 = vpop.permute.xlu0 %487
    %491 = vset.pattern.permute.xlu0 2
    %492 = vperm.xlu0 %491, %v479
    %v493 = vpop.permute.xlu0 %492
    %vm495 = vcmask 457728
    %v497 = vsel %vm495, %v474, 0
    %v500 = vsel %vm495, %v475, 0
    %v503 = vsel %vm495, %v476, 0
    %505 = vmatprep.subr.mxu0 0.0
    %506 = vmatpush1.msra.mxu0 %v466
    %507 = vmatprep.subr.mxu0 0.0
    %508 = vmatpush1.msra.mxu0 %v467
    %509 = vmatprep.subr.mxu0 0.0
    %510 = vmatpush1.msra.mxu0 %v468
    %511 = vmatprep.subr.mxu0 0.0
    %512 = vmatpush1.msra.mxu0 %v469
    %513 = vmatprep.subr.mxu0 0.0
    %514 = vmatpush1.msra.mxu0 %v470
    %515 = vmatprep.subr.mxu0 0.0
    %516 = vmatpush1.msra.mxu0 %v471
    %517 = vmatprep.subr.mxu0 0.0
    %518 = vmatpush1.msra.mxu0 %v472
    %519 = vmatprep.subr.mxu0 0.0
    %520 = vmatpush1.msra.mxu0 0.0
    %521 = vmatprep.subr.mxu0 0.0
    %522 = vmatpush1.msra.mxu0 0.0
    %523 = vmatprep.subr.mxu0 0.0
    %524 = vmatpush1.msra.mxu0 0.0
    %525 = vmatprep.subr.mxu0 0.0
    %526 = vmatpush1.msra.mxu0 0.0
    %527 = vmatprep.subr.mxu0 0.0
    %528 = vmatpush1.msra.mxu0 0.0
    %529 = vmatprep.subr.mxu0 0.0
    %530 = vmatpush1.msra.mxu0 0.0
    %531 = vmatprep.subr.mxu0 0.0
    %532 = vmatpush1.msra.mxu0 0.0
    %533 = vmatprep.subr.mxu0 0.0
    %534 = vmatpush1.msra.mxu0 0.0
    %535 = vmatprep.subr.mxu0 0.0
    %536 = vmatpush1.msra.mxu0 0.0
    %537 = vmatprep.subr.mxu0 0.0
    %538 = vmatpush1.msra.mxu0 0.0
    %539 = vmatprep.subr.mxu0 0.0
    %540 = vmatpush1.msra.mxu0 0.0
    %541 = vmatprep.subr.mxu0 0.0
    %542 = vmatpush1.msra.mxu0 0.0
    %543 = vmatprep.subr.mxu0 0.0
    %544 = vmatpush1.msra.mxu0 0.0
    %545 = vmatprep.subr.mxu0 0.0
    %546 = vmatpush1.msra.mxu0 0.0
    %547 = vmatprep.subr.mxu0 0.0
    %548 = vmatpush1.msra.mxu0 0.0
    %549 = vmatprep.subr.mxu0 0.0
    %550 = vmatpush1.msra.mxu0 0.0
    %551 = vmatprep.subr.mxu0 0.0
    %552 = vmatpush1.msra.mxu0 0.0
    %553 = vmatprep.subr.mxu0 0.0
    %554 = vmatpush1.msra.mxu0 0.0
    %555 = vmatprep.subr.mxu0 0.0
    %556 = vmatpush1.msra.mxu0 0.0
    %557 = vmatprep.subr.mxu0 0.0
    %558 = vmatpush1.msra.mxu0 0.0
    %559 = vmatprep.subr.mxu0 0.0
    %560 = vmatpush1.msra.mxu0 0.0
    %561 = vmatprep.subr.mxu0 0.0
    %562 = vmatpush1.msra.mxu0 0.0
    %563 = vmatprep.subr.mxu0 0.0
    %564 = vmatpush1.msra.mxu0 0.0
    %565 = vmatprep.subr.mxu0 0.0
    %566 = vmatpush1.msra.mxu0 0.0
    %567 = vmatprep.subr.mxu0 0.0
    %568 = vmatpush1.msra.mxu0 0.0
    %569 = vmatprep.mubr.f32.mxu0 0.0
    %570 = vmatmul.mubr.f32.gmra.mrb[0].mxu0 %v497
    %v571 = vpop.f32.mrb[0].mxu0
    %v572 = vadd.f32 %v483, %v571
    %v573 = vpop.f32.mrb[0].mxu0
    %574 = vmatprep.mubr.f32.mxu0 0.0
    %575 = vmatmul.mubr.f32.gmra.mrb[0].mxu0 %v500
    %v576 = vpop.f32.mrb[0].mxu0
    %v577 = vadd.f32 %v488, %v576
    %v578 = vpop.f32.mrb[0].mxu0
    %579 = vmatprep.mubr.f32.mxu0 0.0
    %580 = vmatmul.mubr.f32.gmra.mrb[0].mxu0 %v503
    %v581 = vpop.f32.mrb[0].mxu0
    %v582 = vadd.f32 %v493, %v581
    %v583 = vpop.f32.mrb[0].mxu0
    %584 = vdwg.mxu0
    %vm585 = vcmp.gt.f32.partialorder %v572, 0.0
    %vm586 = vcmp.gt.f32.partialorder %v577, 0.0
    %vm587 = vcmp.gt.f32.partialorder %v582, 0.0
    %v588 = vmul.f32 %v572, 0.01
    %v589 = vmul.f32 %v577, 0.01
    %v590 = vmul.f32 %v582, 0.01
    %v591 = vsel %vm585, %v572, %v588
    %v592 = vsel %vm586, %v577, %v589
    %v593 = vsel %vm587, %v582, %v590
    %s594 = scalar_lea.vmem [#allocation2], 384
    %v595 = vld [vmem:[%s594] sm:$0xff]
    %v596 = vld [vmem:[%s594 + $0x8] sm:$0xff]
    %v597 = vld [vmem:[%s3] sm:$0xff]
    %v598 = vld [vmem:[%s3 + $0x8] sm:$0xff]
    %600 = vset.pattern.permute.xlu0 3
    %601 = vperm.xlu0 %600, %v597
    %v602 = vpop.permute.xlu0 %601
    %605 = vset.pattern.permute.xlu0 3
    %606 = vperm.xlu0 %605, %v598
    %v607 = vpop.permute.xlu0 %606
    %vm609 = vcmask 195584
    %v611 = vsel %vm609, %v595, 0
    %v614 = vsel %vm609, %v596, 0
    %616 = vmatprep.subr.mxu0 0.0
    %617 = vmatpush1.msra.mxu0 %v591
    %618 = vmatprep.subr.mxu0 0.0
    %619 = vmatpush1.msra.mxu0 %v592
    %620 = vmatprep.subr.mxu0 0.0
    %621 = vmatpush1.msra.mxu0 %v593
    %622 = vmatprep.subr.mxu0 0.0
    %623 = vmatpush1.msra.mxu0 0.0
    %624 = vmatprep.subr.mxu0 0.0
    %625 = vmatpush1.msra.mxu0 0.0
    %626 = vmatprep.subr.mxu0 0.0
    %627 = vmatpush1.msra.mxu0 0.0
    %628 = vmatprep.subr.mxu0 0.0
    %629 = vmatpush1.msra.mxu0 0.0
    %630 = vmatprep.subr.mxu0 0.0
    %631 = vmatpush1.msra.mxu0 0.0
    %632 = vmatprep.subr.mxu0 0.0
    %633 = vmatpush1.msra.mxu0 0.0
    %634 = vmatprep.subr.mxu0 0.0
    %635 = vmatpush1.msra.mxu0 0.0
    %636 = vmatprep.subr.mxu0 0.0
    %637 = vmatpush1.msra.mxu0 0.0
    %638 = vmatprep.subr.mxu0 0.0
    %639 = vmatpush1.msra.mxu0 0.0
    %640 = vmatprep.subr.mxu0 0.0
    %641 = vmatpush1.msra.mxu0 0.0
    %642 = vmatprep.subr.mxu0 0.0
    %643 = vmatpush1.msra.mxu0 0.0
    %644 = vmatprep.subr.mxu0 0.0
    %645 = vmatpush1.msra.mxu0 0.0
    %646 = vmatprep.subr.mxu0 0.0
    %647 = vmatpush1.msra.mxu0 0.0
    %648 = vmatprep.subr.mxu0 0.0
    %649 = vmatpush1.msra.mxu0 0.0
    %650 = vmatprep.subr.mxu0 0.0
    %651 = vmatpush1.msra.mxu0 0.0
    %652 = vmatprep.subr.mxu0 0.0
    %653 = vmatpush1.msra.mxu0 0.0
    %654 = vmatprep.subr.mxu0 0.0
    %655 = vmatpush1.msra.mxu0 0.0
    %656 = vmatprep.subr.mxu0 0.0
    %657 = vmatpush1.msra.mxu0 0.0
    %658 = vmatprep.subr.mxu0 0.0
    %659 = vmatpush1.msra.mxu0 0.0
    %660 = vmatprep.subr.mxu0 0.0
    %661 = vmatpush1.msra.mxu0 0.0
    %662 = vmatprep.subr.mxu0 0.0
    %663 = vmatpush1.msra.mxu0 0.0
    %664 = vmatprep.subr.mxu0 0.0
    %665 = vmatpush1.msra.mxu0 0.0
    %666 = vmatprep.subr.mxu0 0.0
    %667 = vmatpush1.msra.mxu0 0.0
    %668 = vmatprep.subr.mxu0 0.0
    %669 = vmatpush1.msra.mxu0 0.0
    %670 = vmatprep.subr.mxu0 0.0
    %671 = vmatpush1.msra.mxu0 0.0
    %672 = vmatprep.subr.mxu0 0.0
    %673 = vmatpush1.msra.mxu0 0.0
    %674 = vmatprep.subr.mxu0 0.0
    %675 = vmatpush1.msra.mxu0 0.0
    %676 = vmatprep.subr.mxu0 0.0
    %677 = vmatpush1.msra.mxu0 0.0
    %678 = vmatprep.subr.mxu0 0.0
    %679 = vmatpush1.msra.mxu0 0.0
    %680 = vmatprep.mubr.f32.mxu0 0.0
    %681 = vmatmul.mubr.f32.gmra.mrb[0].mxu0 %v611
    %v682 = vpop.f32.mrb[0].mxu0
    %v683 = vadd.f32 %v602, %v682
    %v684 = vpop.f32.mrb[0].mxu0
    %685 = vmatprep.mubr.f32.mxu0 0.0
    %686 = vmatmul.mubr.f32.gmra.mrb[0].mxu0 %v614
    %v687 = vpop.f32.mrb[0].mxu0
    %v688 = vadd.f32 %v607, %v687
    %v689 = vpop.f32.mrb[0].mxu0
    %690 = vdwg.mxu0
    %v691 = vmax.f32 %v683, -3.14
    %v692 = vmin.f32 %v691, 3.14
    %v693 = vsub.f32 %v33, %v692
    %v694 = vmul.f32 %v693, %v693
    %v695 = vld [vmem:[%s3] sm:$0xff]
    %697 = vset.pattern.permute.xlu0 5
    %698 = vperm.xlu0 %697, %v695
    %v699 = vpop.permute.xlu0 %698
    %v701 = vmul.f32 %v694, %v699
    %v702 = vrot.slane %v701, 4
    %v703 = vadd.f32 %v701, %v702
    %v704 = vrot.slane %v703, 2
    %v705 = vadd.f32 %v703, %v704
    %v706 = vrot.slane %v705, 1
    %v707 = vadd.f32 %v705, %v706
    %v708 = vmul.f32 %v707, -0.5
    %v709 = vld [vmem:[%s3 + $0x1] sm:$0x1]
    %711 = vset.pattern.permute.xlu0 6
    %712 = vperm.xlu0 %711, %v709
    %v713 = vpop.permute.xlu0 %712
    %v715 = vadd.f32 %v708, %v713
    %vm716 = vcmp.gt.f32.partialorder %v688, 0.0
    %v717 = vmul.f32 %v688, 0.01
    %v718 = vsel %vm716, %v688, %v717
    %719 = vset.pattern.permute.xlu0 4
    %720 = vperm.xlu0 %719, %v598
    %v721 = vpop.permute.xlu0 %720
    %v723 = vmul.f32 %v718, %v721
    %v724 = vrot.slane %v723, 4
    %v725 = vadd.f32 %v723, %v724
    %v726 = vrot.slane %v725, 2
    %v727 = vadd.f32 %v725, %v726
    %v728 = vrot.slane %v727, 1
    %v729 = vadd.f32 %v727, %v728
    %v730 = vld [vmem:[%s3] sm:$0x1]
    %732 = vset.pattern.permute.xlu0 6
    %733 = vperm.xlu0 %732, %v730
    %v734 = vpop.permute.xlu0 %733
    %v736 = vadd.f32 %v729, %v734
    %v737 = vlaneseq
    %v738 = vshrl.u32 %v737, 7
    %vm739 = vcmp.eq.s32.totalorder %v738, 0
    %vm740 = vcmp.eq.s32.totalorder %v738, 1
    %v741 = vlaneseq
    %v742 = vshrl.u32 %v741, 7
    %v743 = vsub.s32 0, %v742
    %v744 = vrot.slane %v736, %v743
    %v745 = vsel %vm740, %v744, 0.0
    %v746 = vlaneseq
    %v747 = vshrl.u32 %v746, 7
    %v748 = vsub.s32 0, %v747
    %v749 = vrot.slane %v715, %v748
    %v750 = vsel %vm739, %v749, %v745
    %751 = vst [vmem:[#allocation5] sm:$0xff] %v750
    // Predicated region
    $region22: #{tpu_custom_call.1} parent=1 // pred_check
      _
    $region23: #{tpu_custom_call.1} parent=1 // pred_check_branch
      %753 = sbr.rel (0) target = $region25
    $region24: #{tpu_custom_call.1} parent=1 // pred_region
      %s755 = ssub.s32 128, 128
      %756 = vsyncadd [#allocation4], %s755
      %s758 = sshll.u32 [#allocation5], 4
      %s759 = int_to_ptr.vmem [resolvable:$true] %s758
      %761 = dma.vmem_to_hbm [thread:$0]  %s759, 128, %s4, [#allocation4]
    $region25: #{tpu_custom_call.1} parent=1 // pred_fallthru
      _
    // Predicated region
    $region26: #{tpu_custom_call.1} parent=1 // pred_check
      _
    $region27: #{tpu_custom_call.1} parent=1 // pred_check_branch
      %763 = sbr.rel (0) target = $region29
    $region28: #{tpu_custom_call.1} parent=1 // pred_region
      %764 = dma.done [#allocation4], 128
    $region29: #{tpu_custom_call.1} parent=1 // pred_fallthru
      _
    %765 = vsyncpa [#allocation3], 1
    %766 = vsyncpa [#allocation4], 1

</llo_original>
